<compile_context>
chip_gen: v6e
topology: v6e:2x2x1
jax: 0.10.0
libtpu: 0.0.40
codegen_flags: <defaults>
</compile_context>

<pallas_src>
import numpy as np
import jax
import jax.numpy as jnp
from jax.experimental import pallas as pl
from jax.experimental.pallas import tpu as pltpu


HIDDEN = 128  # hidden_dims = [128, 128] in the PyTorch module


def _round_up(x, m):
    return (x + m - 1) // m * m


def _choose_batch_tile(B, *, min_tb=256, max_tb=2048):
    """Batch tile: multiple of 8; aims for ~4 grid steps (2 per TC on v7x) for large B."""
    b8 = _round_up(max(B, 1), 8)
    if b8 <= min_tb:
        return b8                      # small batch: single tile, grid=(1,)
    tb = _round_up(-(-b8 // 4), 8)     # target >= 4 grid steps
    return max(min_tb, min(tb, max_tb))


def policy_kernel(x_ref, w1_ref, b1_ref, w2_ref, b2_ref,
                  wm_ref, bm_ref, ws_ref, bs_ref,
                  mean_ref, std_ref):
    # Backbone: Linear + ReLU, Linear + ReLU (f32 inputs, f32 MXU accumulation).
    h = jnp.dot(x_ref[...], w1_ref[...],
                preferred_element_type=jnp.float32) + b1_ref[...]
    h = jnp.maximum(h, 0.0)
    h = jnp.dot(h, w2_ref[...],
                preferred_element_type=jnp.float32) + b2_ref[...]
    h = jnp.maximum(h, 0.0)

    # Heads: two narrow (HIDDEN, A) matmuls, results written straight to the outputs.
    zm = jnp.dot(h, wm_ref[...],
                 preferred_element_type=jnp.float32) + bm_ref[...]
    zs = jnp.dot(h, ws_ref[...],
                 preferred_element_type=jnp.float32) + bs_ref[...]
    mean_ref[...] = jnp.tanh(zm)                       # EUP
    std_ref[...] = jnp.exp(jnp.clip(zs, -20.0, 2.0))   # EUP


def policy_forward(x, params, action_dim):
    """x: (B, obs_dim) float32. params: dict with w1,b1,w2,b2,wm,bm,ws,bs (transposed)."""
    B, obs_dim = x.shape
    A = action_dim

    TB = _choose_batch_tile(B)
    B_pad = _round_up(B, TB)
    if B_pad != B:
        x = jnp.pad(x, ((0, B_pad - B), (0, 0)))

    grid = (B_pad // TB,)

    # VMEM budget: double-buffered x/mean/std tiles + (double-buffered) resident
    # weights + slack for the (TB, HIDDEN) activation intermediates.
    weight_elems = (obs_dim * HIDDEN + HIDDEN + HIDDEN * HIDDEN + HIDDEN
                    + 2 * (HIDDEN * A + A))
    vmem_need = 4 * (2 * TB * obs_dim + 2 * 2 * TB * A
                     + 2 * weight_elems + 4 * TB * HIDDEN)
    vmem_limit = int(min(max(vmem_need + (8 << 20), 32 << 20), 64 << 20))

    flops = 2 * B_pad * (obs_dim * HIDDEN + HIDDEN * HIDDEN + 2 * HIDDEN * A)
    bytes_accessed = 4 * (B_pad * obs_dim + weight_elems + 2 * B_pad * A)
    cost = pl.CostEstimate(flops=flops,
                           transcendentals=2 * B_pad * A,
                           bytes_accessed=bytes_accessed)

    mean, std = pl.pallas_call(
        policy_kernel,
        out_shape=(jax.ShapeDtypeStruct((B_pad, A), jnp.float32),
                   jax.ShapeDtypeStruct((B_pad, A), jnp.float32)),
        grid=grid,
        in_specs=[
            pl.BlockSpec((TB, obs_dim), lambda i: (i, 0)),      # x: streamed
            pl.BlockSpec((obs_dim, HIDDEN), lambda i: (0, 0)),  # w1: VMEM-resident
            pl.BlockSpec((1, HIDDEN), lambda i: (0, 0)),        # b1
            pl.BlockSpec((HIDDEN, HIDDEN), lambda i: (0, 0)),   # w2
            pl.BlockSpec((1, HIDDEN), lambda i: (0, 0)),        # b2
            pl.BlockSpec((HIDDEN, A), lambda i: (0, 0)),        # mean head W
            pl.BlockSpec((1, A), lambda i: (0, 0)),             # mean head b
            pl.BlockSpec((HIDDEN, A), lambda i: (0, 0)),        # log_std head W
            pl.BlockSpec((1, A), lambda i: (0, 0)),             # log_std head b
        ],
        out_specs=[pl.BlockSpec((TB, A), lambda i: (i, 0)),     # mean: streamed
                   pl.BlockSpec((TB, A), lambda i: (i, 0))],    # std: streamed
        compiler_params=pltpu.CompilerParams(
            dimension_semantics=("parallel",),
            vmem_limit_bytes=vmem_limit),
        cost_estimate=cost,
    )(x, params["w1"], params["b1"], params["w2"], params["b2"],
      params["wm"], params["bm"], params["ws"], params["bs"])

    if B_pad != B:
        mean, std = mean[:B], std[:B]
    return mean, std


def init_params(key, obs_dim, action_dim, hidden_dims=(128, 128)):
    """Deterministic init mirroring the PyTorch module:
    orthogonal_(weight, gain=sqrt(2)), bias = 0, for backbone and both heads.
    Weights are stored transposed: (in_features, out_features)."""
    assert tuple(hidden_dims) == (HIDDEN, HIDDEN), "kernel is specialized to [128,128]"
    gain = np.sqrt(2.0)
    ortho = jax.nn.initializers.orthogonal(scale=gain)
    dims = [obs_dim] + list(hidden_dims)
    params = {}
    keys = jax.random.split(key, len(hidden_dims) + 2)
    # backbone
    for i, (din, dout) in enumerate(zip(dims[:-1], dims[1:])):
        # PyTorch weight is (out, in); orthogonal init there, then transpose -> (in, out)
        params[f"w{i+1}"] = ortho(keys[i], (dout, din), jnp.float32).T
        params[f"b{i+1}"] = jnp.zeros((1, dout), jnp.float32)
    prev = dims[-1]
    params["wm"] = ortho(keys[-2], (action_dim, prev), jnp.float32).T  # (prev, A)
    params["bm"] = jnp.zeros((1, action_dim), jnp.float32)
    params["ws"] = ortho(keys[-1], (action_dim, prev), jnp.float32).T  # (prev, A)
    params["bs"] = jnp.zeros((1, action_dim), jnp.float32)
    return params


def reference_forward(x, params):
    """Pure-jnp reference matching the PyTorch forward."""
    h = jnp.maximum(x @ params["w1"] + params["b1"], 0.0)
    h = jnp.maximum(h @ params["w2"] + params["b2"], 0.0)
    mean = jnp.tanh(h @ params["wm"] + params["bm"])
    std = jnp.exp(jnp.clip(h @ params["ws"] + params["bs"], -20.0, 2.0))
    return mean, std


if __name__ == "__main__":
    key = jax.random.PRNGKey(0)
    k_x, k_p = jax.random.split(key)

    B, obs_dim, action_dim = 2, 16, 4
    x = jax.random.normal(k_x, (B, obs_dim), dtype=jnp.float32)
    params = init_params(k_p, obs_dim, action_dim, hidden_dims=(128, 128))

    mean, std = policy_forward(x, params, action_dim)
    jax.block_until_ready((mean, std))

    # shape + range sanity (tanh / exp(clip(., -20, 2)))
    assert mean.shape == (B, action_dim) and std.shape == (B, action_dim)
    assert bool(jnp.all(jnp.abs(mean) <= 1.0))
    assert bool(jnp.all(std > 0.0)) and bool(jnp.all(std <= jnp.exp(2.0) + 1e-5))

    # numerical check against pure-jnp reference
    mean_ref, std_ref = reference_forward(x, params)
    assert bool(jnp.allclose(mean, mean_ref, rtol=1e-5, atol=1e-5))
    assert bool(jnp.allclose(std, std_ref, rtol=1e-5, atol=1e-5))

    print("KERNEL_OK")
</pallas_src>

<mosaic_0001>
module attributes {stable_mosaic.version = 11 : i64} {
  func.func @policy_kernel(%arg0: i32, %arg1: memref<8x16xf32, #tpu.memory_space<vmem>>, %arg2: memref<16x128xf32, #tpu.memory_space<vmem>>, %arg3: memref<1x128xf32, #tpu.memory_space<vmem>>, %arg4: memref<128x128xf32, #tpu.memory_space<vmem>>, %arg5: memref<1x128xf32, #tpu.memory_space<vmem>>, %arg6: memref<128x4xf32, #tpu.memory_space<vmem>>, %arg7: memref<1x4xf32, #tpu.memory_space<vmem>>, %arg8: memref<128x4xf32, #tpu.memory_space<vmem>>, %arg9: memref<1x4xf32, #tpu.memory_space<vmem>>, %arg10: memref<8x4xf32, #tpu.memory_space<vmem>>, %arg11: memref<8x4xf32, #tpu.memory_space<vmem>>) attributes {dimension_semantics = [#tpu.dimension_semantics<parallel>], iteration_bounds = array<i64: 1>, scalar_prefetch = 0 : i64, scratch_operands = 0 : i64, tpu.core_type = #tpu.core_type<tc>, window_params = [{transform_indices = @transform_0, window_bounds = array<i64: 8, 16>}, {pipeline_mode = #tpu.pipeline_mode<synchronous>, transform_indices = @transform_1, window_bounds = array<i64: 16, 128>}, {pipeline_mode = #tpu.pipeline_mode<synchronous>, transform_indices = @transform_2, window_bounds = array<i64: 1, 128>}, {pipeline_mode = #tpu.pipeline_mode<synchronous>, transform_indices = @transform_3, window_bounds = array<i64: 128, 128>}, {pipeline_mode = #tpu.pipeline_mode<synchronous>, transform_indices = @transform_4, window_bounds = array<i64: 1, 128>}, {pipeline_mode = #tpu.pipeline_mode<synchronous>, transform_indices = @transform_5, window_bounds = array<i64: 128, 4>}, {pipeline_mode = #tpu.pipeline_mode<synchronous>, transform_indices = @transform_6, window_bounds = array<i64: 1, 4>}, {pipeline_mode = #tpu.pipeline_mode<synchronous>, transform_indices = @transform_7, window_bounds = array<i64: 128, 4>}, {pipeline_mode = #tpu.pipeline_mode<synchronous>, transform_indices = @transform_8, window_bounds = array<i64: 1, 4>}, {transform_indices = @transform_9, window_bounds = array<i64: 8, 4>}, {transform_indices = @transform_10, window_bounds = array<i64: 8, 4>}]} {
    %c0 = arith.constant 0 : index
    %c0_0 = arith.constant 0 : index
    %0 = vector.load %arg1[%c0, %c0_0] : memref<8x16xf32, #tpu.memory_space<vmem>>, vector<8x16xf32>
    %c0_1 = arith.constant 0 : index
    %c0_2 = arith.constant 0 : index
    %1 = vector.load %arg2[%c0_1, %c0_2] : memref<16x128xf32, #tpu.memory_space<vmem>>, vector<16x128xf32>
    %cst = arith.constant dense<0.000000e+00> : vector<8x128xf32>
    %2 = tpu.matmul %0, %1, %cst {dimension_numbers = #tpu.dot_dimension_numbers<[1], [0], [0], [1], [0, 0, 1, 1], [], []>} : vector<8x16xf32>, vector<16x128xf32>, vector<8x128xf32> -> vector<8x128xf32>
    %c0_3 = arith.constant 0 : index
    %c0_4 = arith.constant 0 : index
    %3 = vector.load %arg3[%c0_3, %c0_4] : memref<1x128xf32, #tpu.memory_space<vmem>>, vector<1x128xf32>
    %4 = vector.broadcast %3 : vector<1x128xf32> to vector<8x128xf32>
    %5 = arith.addf %2, %4 : vector<8x128xf32>
    %cst_5 = arith.constant 0.000000e+00 : f32
    %6 = vector.broadcast %cst_5 : f32 to vector<8x128xf32>
    %7 = arith.maximumf %5, %6 : vector<8x128xf32>
    %c0_6 = arith.constant 0 : index
    %c0_7 = arith.constant 0 : index
    %8 = vector.load %arg4[%c0_6, %c0_7] : memref<128x128xf32, #tpu.memory_space<vmem>>, vector<128x128xf32>
    %cst_8 = arith.constant dense<0.000000e+00> : vector<8x128xf32>
    %9 = tpu.matmul %7, %8, %cst_8 {dimension_numbers = #tpu.dot_dimension_numbers<[1], [0], [0], [1], [0, 0, 1, 1], [], []>} : vector<8x128xf32>, vector<128x128xf32>, vector<8x128xf32> -> vector<8x128xf32>
    %c0_9 = arith.constant 0 : index
    %c0_10 = arith.constant 0 : index
    %10 = vector.load %arg5[%c0_9, %c0_10] : memref<1x128xf32, #tpu.memory_space<vmem>>, vector<1x128xf32>
    %11 = vector.broadcast %10 : vector<1x128xf32> to vector<8x128xf32>
    %12 = arith.addf %9, %11 : vector<8x128xf32>
    %cst_11 = arith.constant 0.000000e+00 : f32
    %13 = vector.broadcast %cst_11 : f32 to vector<8x128xf32>
    %14 = arith.maximumf %12, %13 : vector<8x128xf32>
    %c0_12 = arith.constant 0 : index
    %c0_13 = arith.constant 0 : index
    %15 = vector.load %arg6[%c0_12, %c0_13] : memref<128x4xf32, #tpu.memory_space<vmem>>, vector<128x4xf32>
    %cst_14 = arith.constant dense<0.000000e+00> : vector<8x4xf32>
    %16 = tpu.matmul %14, %15, %cst_14 {dimension_numbers = #tpu.dot_dimension_numbers<[1], [0], [0], [1], [0, 0, 1, 1], [], []>} : vector<8x128xf32>, vector<128x4xf32>, vector<8x4xf32> -> vector<8x4xf32>
    %c0_15 = arith.constant 0 : index
    %c0_16 = arith.constant 0 : index
    %17 = vector.load %arg7[%c0_15, %c0_16] : memref<1x4xf32, #tpu.memory_space<vmem>>, vector<1x4xf32>
    %18 = vector.broadcast %17 : vector<1x4xf32> to vector<8x4xf32>
    %19 = arith.addf %16, %18 : vector<8x4xf32>
    %c0_17 = arith.constant 0 : index
    %c0_18 = arith.constant 0 : index
    %20 = vector.load %arg8[%c0_17, %c0_18] : memref<128x4xf32, #tpu.memory_space<vmem>>, vector<128x4xf32>
    %cst_19 = arith.constant dense<0.000000e+00> : vector<8x4xf32>
    %21 = tpu.matmul %14, %20, %cst_19 {dimension_numbers = #tpu.dot_dimension_numbers<[1], [0], [0], [1], [0, 0, 1, 1], [], []>} : vector<8x128xf32>, vector<128x4xf32>, vector<8x4xf32> -> vector<8x4xf32>
    %c0_20 = arith.constant 0 : index
    %c0_21 = arith.constant 0 : index
    %22 = vector.load %arg9[%c0_20, %c0_21] : memref<1x4xf32, #tpu.memory_space<vmem>>, vector<1x4xf32>
    %23 = vector.broadcast %22 : vector<1x4xf32> to vector<8x4xf32>
    %24 = arith.addf %21, %23 : vector<8x4xf32>
    %25 = math.tanh %19 : vector<8x4xf32>
    %c0_22 = arith.constant 0 : index
    %c0_23 = arith.constant 0 : index
    %26 = vector.load %arg10[%c0_22, %c0_23] : memref<8x4xf32, #tpu.memory_space<vmem>>, vector<8x4xf32>
    tpu.vector_store %arg10[%c0_22, %c0_23], %25 {strides = array<i32>} : memref<8x4xf32, #tpu.memory_space<vmem>>, vector<8x4xf32>,
    %cst_24 = arith.constant -2.000000e+01 : f32
    %cst_25 = arith.constant 2.000000e+00 : f32
    %27 = vector.broadcast %cst_24 : f32 to vector<8x4xf32>
    %28 = arith.maximumf %27, %24 : vector<8x4xf32>
    %29 = vector.broadcast %cst_25 : f32 to vector<8x4xf32>
    %30 = arith.minimumf %29, %28 : vector<8x4xf32>
    %31 = math.exp %30 : vector<8x4xf32>
    %c0_26 = arith.constant 0 : index
    %c0_27 = arith.constant 0 : index
    %32 = vector.load %arg11[%c0_26, %c0_27] : memref<8x4xf32, #tpu.memory_space<vmem>>, vector<8x4xf32>
    tpu.vector_store %arg11[%c0_26, %c0_27], %31 {strides = array<i32>} : memref<8x4xf32, #tpu.memory_space<vmem>>, vector<8x4xf32>,
    return
  }
  func.func @transform_0(%arg0: i32) -> (i32, i32) {
    %c0_i32 = arith.constant 0 : i32
    %c0_i32_0 = arith.constant 0 : i32
    return %arg0, %c0_i32 : i32, i32
  }
  func.func @transform_1(%arg0: i32) -> (i32, i32) {
    %c0_i32 = arith.constant 0 : i32
    %c0_i32_0 = arith.constant 0 : i32
    %c0_i32_1 = arith.constant 0 : i32
    return %c0_i32, %c0_i32_0 : i32, i32
  }
  func.func @transform_2(%arg0: i32) -> (i32, i32) {
    %c0_i32 = arith.constant 0 : i32
    %c0_i32_0 = arith.constant 0 : i32
    %c0_i32_1 = arith.constant 0 : i32
    return %c0_i32, %c0_i32_0 : i32, i32
  }
  func.func @transform_3(%arg0: i32) -> (i32, i32) {
    %c0_i32 = arith.constant 0 : i32
    %c0_i32_0 = arith.constant 0 : i32
    %c0_i32_1 = arith.constant 0 : i32
    return %c0_i32, %c0_i32_0 : i32, i32
  }
  func.func @transform_4(%arg0: i32) -> (i32, i32) {
    %c0_i32 = arith.constant 0 : i32
    %c0_i32_0 = arith.constant 0 : i32
    %c0_i32_1 = arith.constant 0 : i32
    return %c0_i32, %c0_i32_0 : i32, i32
  }
  func.func @transform_5(%arg0: i32) -> (i32, i32) {
    %c0_i32 = arith.constant 0 : i32
    %c0_i32_0 = arith.constant 0 : i32
    %c0_i32_1 = arith.constant 0 : i32
    return %c0_i32, %c0_i32_0 : i32, i32
  }
  func.func @transform_6(%arg0: i32) -> (i32, i32) {
    %c0_i32 = arith.constant 0 : i32
    %c0_i32_0 = arith.constant 0 : i32
    %c0_i32_1 = arith.constant 0 : i32
    return %c0_i32, %c0_i32_0 : i32, i32
  }
  func.func @transform_7(%arg0: i32) -> (i32, i32) {
    %c0_i32 = arith.constant 0 : i32
    %c0_i32_0 = arith.constant 0 : i32
    %c0_i32_1 = arith.constant 0 : i32
    return %c0_i32, %c0_i32_0 : i32, i32
  }
  func.func @transform_8(%arg0: i32) -> (i32, i32) {
    %c0_i32 = arith.constant 0 : i32
    %c0_i32_0 = arith.constant 0 : i32
    %c0_i32_1 = arith.constant 0 : i32
    return %c0_i32, %c0_i32_0 : i32, i32
  }
  func.func @transform_9(%arg0: i32) -> (i32, i32) {
    %c0_i32 = arith.constant 0 : i32
    %c0_i32_0 = arith.constant 0 : i32
    return %arg0, %c0_i32 : i32, i32
  }
  func.func @transform_10(%arg0: i32) -> (i32, i32) {
    %c0_i32 = arith.constant 0 : i32
    %c0_i32_0 = arith.constant 0 : i32
    return %arg0, %c0_i32 : i32, i32
  }
}

</mosaic_0001>

<llo_original>
// kernel: tpu_custom_call.1
$region0: #{tpu_custom_call.1}
  #allocation0 [shape = 'u32[]', space=smem, size = 0x4, offset = 0x4, fixed_abs, tag = 'smem constant byte address 0x4 - core index']
  #allocation1 [shape = 'u32[144,128]{1,0:T(1,128)}', space=vmem, size = 0x12000, scoped, tag = 'internal scratch']
  %s0 = inlined_call_operand.vmem [shape: f32[8,16], index: 0, kind: input, shape index: {}]
  %s1 = inlined_call_operand.vmem [shape: f32[16,128], index: 1, kind: input, shape index: {}]
  %s2 = inlined_call_operand.vmem [shape: f32[1,128], index: 2, kind: input, shape index: {}]
  %s3 = inlined_call_operand.vmem [shape: f32[128,128], index: 3, kind: input, shape index: {}]
  %s4 = inlined_call_operand.vmem [shape: f32[1,128], index: 4, kind: input, shape index: {}]
  %s5 = inlined_call_operand.vmem [shape: f32[128,4], index: 5, kind: input, shape index: {}]
  %s6 = inlined_call_operand.vmem [shape: f32[1,4], index: 6, kind: input, shape index: {}]
  %s7 = inlined_call_operand.vmem [shape: f32[128,4], index: 7, kind: input, shape index: {}]
  %s8 = inlined_call_operand.vmem [shape: f32[1,4], index: 8, kind: input, shape index: {}]
  %s9 = inlined_call_operand.vmem [shape: f32[8,4], index: 9, kind: output, shape index: {0}]
  %s10 = inlined_call_operand.vmem [shape: f32[8,4], index: 10, kind: output, shape index: {1}]
  %11 = xla_tuple %s9, %s10
  %s12 = sld [smem:[#allocation0]]
  $region54: #{tpu_custom_call.1} parent=0
    _
  %s14 = ssub.s32 1, %s12
  %s15 = scalar_select 0, %s14, %s12
  // Predicated region
  $region2: #{tpu_custom_call.1} parent=0 // pred_check
    _
  $region3: #{tpu_custom_call.1} parent=0 // pred_check_branch
    %17 = sbr.rel (0) target = $region5
  $region4: #{tpu_custom_call.1} parent=0 // pred_region
    _
  $region5: #{tpu_custom_call.1} parent=0 // pred_fallthru
    _
  // Predicated region
  $region6: #{tpu_custom_call.1} parent=0 // pred_check
    _
  $region7: #{tpu_custom_call.1} parent=0 // pred_check_branch
    %19 = sbr.rel (0) target = $region9
  $region8: #{tpu_custom_call.1} parent=0 // pred_region
    _
  $region9: #{tpu_custom_call.1} parent=0 // pred_fallthru
    _
  // Predicated region
  $region10: #{tpu_custom_call.1} parent=0 // pred_check
    _
  $region11: #{tpu_custom_call.1} parent=0 // pred_check_branch
    %21 = sbr.rel (0) target = $region13
  $region12: #{tpu_custom_call.1} parent=0 // pred_region
    _
  $region13: #{tpu_custom_call.1} parent=0 // pred_fallthru
    _
  // Predicated region
  $region14: #{tpu_custom_call.1} parent=0 // pred_check
    _
  $region15: #{tpu_custom_call.1} parent=0 // pred_check_branch
    %23 = sbr.rel (0) target = $region17
  $region16: #{tpu_custom_call.1} parent=0 // pred_region
    _
  $region17: #{tpu_custom_call.1} parent=0 // pred_fallthru
    _
  // Predicated region
  $region18: #{tpu_custom_call.1} parent=0 // pred_check
    _
  $region19: #{tpu_custom_call.1} parent=0 // pred_check_branch
    %25 = sbr.rel (0) target = $region21
  $region20: #{tpu_custom_call.1} parent=0 // pred_region
    _
  $region21: #{tpu_custom_call.1} parent=0 // pred_fallthru
    _
  // Predicated region
  $region22: #{tpu_custom_call.1} parent=0 // pred_check
    _
  $region23: #{tpu_custom_call.1} parent=0 // pred_check_branch
    %27 = sbr.rel (0) target = $region25
  $region24: #{tpu_custom_call.1} parent=0 // pred_region
    _
  $region25: #{tpu_custom_call.1} parent=0 // pred_fallthru
    _
  // Predicated region
  $region26: #{tpu_custom_call.1} parent=0 // pred_check
    _
  $region27: #{tpu_custom_call.1} parent=0 // pred_check_branch
    %29 = sbr.rel (0) target = $region29
  $region28: #{tpu_custom_call.1} parent=0 // pred_region
    _
  $region29: #{tpu_custom_call.1} parent=0 // pred_fallthru
    _
  // Predicated region
  $region30: #{tpu_custom_call.1} parent=0 // pred_check
    _
  $region31: #{tpu_custom_call.1} parent=0 // pred_check_branch
    %31 = sbr.rel (0) target = $region33
  $region32: #{tpu_custom_call.1} parent=0 // pred_region
    _
  $region33: #{tpu_custom_call.1} parent=0 // pred_fallthru
    _
  // Predicated region
  $region34: #{tpu_custom_call.1} parent=0 // pred_check
    _
  $region35: #{tpu_custom_call.1} parent=0 // pred_check_branch
    %33 = sbr.rel (0) target = $region37
  $region36: #{tpu_custom_call.1} parent=0 // pred_region
    _
  $region37: #{tpu_custom_call.1} parent=0 // pred_fallthru
    _
  %v34 = vld [vmem:[%s0] sm:$0xff]
  %v35 = vld [vmem:[%s1] sm:$0xff]
  %v36 = vld [vmem:[%s1 + $0x8] sm:$0xff]
  %v37 = vld [vmem:[%s2] sm:$0x1]
  %v39 = vlaneseq
  %v40 = vshrl.u32 %v39, 7
  %v41 = vsub.s32 0, %v40
  %v42 = vrot.slane %v37, %v41
  %vm44 = vcmask 130048
  %v46 = vsel %vm44, %v34, 0
  %48 = vmatprep.subr.mxu0 0.0
  %49 = vmatpush1.msra.mxu0 0.0
  %50 = vmatprep.subr.mxu0 0.0
  %51 = vmatpush1.msra.mxu0 0.0
  %52 = vmatprep.subr.mxu0 0.0
  %53 = vmatpush1.msra.mxu0 0.0
  %54 = vmatprep.subr.mxu0 0.0
  %55 = vmatpush1.msra.mxu0 0.0
  %56 = vmatprep.subr.mxu0 0.0
  %57 = vmatpush1.msra.mxu0 0.0
  %58 = vmatprep.subr.mxu0 0.0
  %59 = vmatpush1.msra.mxu0 0.0
  %60 = vmatprep.subr.mxu0 0.0
  %61 = vmatpush1.msra.mxu0 0.0
  %62 = vmatprep.subr.mxu0 0.0
  %63 = vmatpush1.msra.mxu0 0.0
  %64 = vmatprep.subr.mxu0 0.0
  %65 = vmatpush1.msra.mxu0 0.0
  %66 = vmatprep.subr.mxu0 0.0
  %67 = vmatpush1.msra.mxu0 0.0
  %68 = vmatprep.subr.mxu0 0.0
  %69 = vmatpush1.msra.mxu0 0.0
  %70 = vmatprep.subr.mxu0 0.0
  %71 = vmatpush1.msra.mxu0 0.0
  %72 = vmatprep.subr.mxu0 0.0
  %73 = vmatpush1.msra.mxu0 0.0
  %74 = vmatprep.subr.mxu0 0.0
  %75 = vmatpush1.msra.mxu0 0.0
  %76 = vmatprep.subr.mxu0 0.0
  %77 = vmatpush1.msra.mxu0 %v36
  %78 = vmatprep.subr.mxu0 0.0
  %79 = vmatpush1.msra.mxu0 %v35
  %80 = vmatprep.subr.mxu0 0.0
  %81 = vmatpush2.msra.mxu0 0.0
  %82 = vmatprep.subr.mxu0 0.0
  %83 = vmatpush2.msra.mxu0 0.0
  %84 = vmatprep.subr.mxu0 0.0
  %85 = vmatpush2.msra.mxu0 0.0
  %86 = vmatprep.subr.mxu0 0.0
  %87 = vmatpush2.msra.mxu0 0.0
  %88 = vmatprep.subr.mxu0 0.0
  %89 = vmatpush2.msra.mxu0 0.0
  %90 = vmatprep.subr.mxu0 0.0
  %91 = vmatpush2.msra.mxu0 0.0
  %92 = vmatprep.subr.mxu0 0.0
  %93 = vmatpush2.msra.mxu0 0.0
  %94 = vmatprep.subr.mxu0 0.0
  %95 = vmatpush2.msra.mxu0 0.0
  %96 = vmatprep.subr.mxu0 0.0
  %97 = vmatpush2.msra.mxu0 0.0
  %98 = vmatprep.subr.mxu0 0.0
  %99 = vmatpush2.msra.mxu0 0.0
  %100 = vmatprep.subr.mxu0 0.0
  %101 = vmatpush2.msra.mxu0 0.0
  %102 = vmatprep.subr.mxu0 0.0
  %103 = vmatpush2.msra.mxu0 0.0
  %104 = vmatprep.subr.mxu0 0.0
  %105 = vmatpush2.msra.mxu0 0.0
  %106 = vmatprep.subr.mxu0 0.0
  %107 = vmatpush2.msra.mxu0 0.0
  %108 = vmatprep.subr.mxu0 0.0
  %109 = vmatpush2.msra.mxu0 0.0
  %110 = vmatprep.subr.mxu0 0.0
  %111 = vmatpush2.msra.mxu0 0.0
  %112 = vmatprep.mubr.f32.mxu0 0.0
  %113 = vmatmul.mubr.f32.gmra.mxu0 %v46
  %v114 = vpop.f32.mrf.mxu0
  %v115 = vadd.f32 %v42, %v114
  %v116 = vpop.f32.mrf.mxu0
  %117 = vdwg.mxu0
  %v118 = vmax.f32 %v115, 0.0
  %v119 = vld [vmem:[%s3] sm:$0xff]
  %v120 = vld [vmem:[%s3 + $0x8] sm:$0xff]
  %v121 = vld [vmem:[%s3 + $0x10] sm:$0xff]
  %v122 = vld [vmem:[%s3 + $0x18] sm:$0xff]
  %v123 = vld [vmem:[%s3 + $0x20] sm:$0xff]
  %v124 = vld [vmem:[%s3 + $0x28] sm:$0xff]
  %v125 = vld [vmem:[%s3 + $0x30] sm:$0xff]
  %v126 = vld [vmem:[%s3 + $0x38] sm:$0xff]
  %v127 = vld [vmem:[%s3 + $0x40] sm:$0xff]
  %v128 = vld [vmem:[%s3 + $0x48] sm:$0xff]
  %v129 = vld [vmem:[%s3 + $0x50] sm:$0xff]
  %v130 = vld [vmem:[%s3 + $0x58] sm:$0xff]
  %v131 = vld [vmem:[%s3 + $0x60] sm:$0xff]
  %v132 = vld [vmem:[%s3 + $0x68] sm:$0xff]
  %v133 = vld [vmem:[%s3 + $0x70] sm:$0xff]
  %v134 = vld [vmem:[%s3 + $0x78] sm:$0xff]
  %v135 = vld [vmem:[%s4] sm:$0x1]
  %v137 = vlaneseq
  %v138 = vshrl.u32 %v137, 7
  %v139 = vsub.s32 0, %v138
  %v140 = vrot.slane %v135, %v139
  %142 = vmatprep.subr.mxu0 0.0
  %143 = vmatpush1.msra.mxu0 %v134
  %144 = vmatprep.subr.mxu0 0.0
  %145 = vmatpush1.msra.mxu0 %v133
  %146 = vmatprep.subr.mxu0 0.0
  %147 = vmatpush1.msra.mxu0 %v132
  %148 = vmatprep.subr.mxu0 0.0
  %149 = vmatpush1.msra.mxu0 %v131
  %150 = vmatprep.subr.mxu0 0.0
  %151 = vmatpush1.msra.mxu0 %v130
  %152 = vmatprep.subr.mxu0 0.0
  %153 = vmatpush1.msra.mxu0 %v129
  %154 = vmatprep.subr.mxu0 0.0
  %155 = vmatpush1.msra.mxu0 %v128
  %156 = vmatprep.subr.mxu0 0.0
  %157 = vmatpush1.msra.mxu0 %v127
  %158 = vmatprep.subr.mxu0 0.0
  %159 = vmatpush1.msra.mxu0 %v126
  %160 = vmatprep.subr.mxu0 0.0
  %161 = vmatpush1.msra.mxu0 %v125
  %162 = vmatprep.subr.mxu0 0.0
  %163 = vmatpush1.msra.mxu0 %v124
  %164 = vmatprep.subr.mxu0 0.0
  %165 = vmatpush1.msra.mxu0 %v123
  %166 = vmatprep.subr.mxu0 0.0
  %167 = vmatpush1.msra.mxu0 %v122
  %168 = vmatprep.subr.mxu0 0.0
  %169 = vmatpush1.msra.mxu0 %v121
  %170 = vmatprep.subr.mxu0 0.0
  %171 = vmatpush1.msra.mxu0 %v120
  %172 = vmatprep.subr.mxu0 0.0
  %173 = vmatpush1.msra.mxu0 %v119
  %174 = vmatprep.subr.mxu0 0.0
  %175 = vmatpush2.msra.mxu0 0.0
  %176 = vmatprep.subr.mxu0 0.0
  %177 = vmatpush2.msra.mxu0 0.0
  %178 = vmatprep.subr.mxu0 0.0
  %179 = vmatpush2.msra.mxu0 0.0
  %180 = vmatprep.subr.mxu0 0.0
  %181 = vmatpush2.msra.mxu0 0.0
  %182 = vmatprep.subr.mxu0 0.0
  %183 = vmatpush2.msra.mxu0 0.0
  %184 = vmatprep.subr.mxu0 0.0
  %185 = vmatpush2.msra.mxu0 0.0
  %186 = vmatprep.subr.mxu0 0.0
  %187 = vmatpush2.msra.mxu0 0.0
  %188 = vmatprep.subr.mxu0 0.0
  %189 = vmatpush2.msra.mxu0 0.0
  %190 = vmatprep.subr.mxu0 0.0
  %191 = vmatpush2.msra.mxu0 0.0
  %192 = vmatprep.subr.mxu0 0.0
  %193 = vmatpush2.msra.mxu0 0.0
  %194 = vmatprep.subr.mxu0 0.0
  %195 = vmatpush2.msra.mxu0 0.0
  %196 = vmatprep.subr.mxu0 0.0
  %197 = vmatpush2.msra.mxu0 0.0
  %198 = vmatprep.subr.mxu0 0.0
  %199 = vmatpush2.msra.mxu0 0.0
  %200 = vmatprep.subr.mxu0 0.0
  %201 = vmatpush2.msra.mxu0 0.0
  %202 = vmatprep.subr.mxu0 0.0
  %203 = vmatpush2.msra.mxu0 0.0
  %204 = vmatprep.subr.mxu0 0.0
  %205 = vmatpush2.msra.mxu0 0.0
  %206 = vmatprep.mubr.f32.mxu0 0.0
  %207 = vmatmul.mubr.f32.gmra.mxu0 %v118
  %v208 = vpop.f32.mrf.mxu0
  %v209 = vadd.f32 %v140, %v208
  %v210 = vpop.f32.mrf.mxu0
  %211 = vdwg.mxu0
  %v212 = vmax.f32 %v209, 0.0
  %v213 = vld [vmem:[%s5] sm:$0xff]
  %v214 = vld [vmem:[%s5 + $0x8] sm:$0xff]
  %v215 = vld [vmem:[%s5 + $0x10] sm:$0xff]
  %v216 = vld [vmem:[%s5 + $0x18] sm:$0xff]
  %v217 = vld [vmem:[%s5 + $0x20] sm:$0xff]
  %v218 = vld [vmem:[%s5 + $0x28] sm:$0xff]
  %v219 = vld [vmem:[%s5 + $0x30] sm:$0xff]
  %v220 = vld [vmem:[%s5 + $0x38] sm:$0xff]
  %v221 = vld [vmem:[%s5 + $0x40] sm:$0xff]
  %v222 = vld [vmem:[%s5 + $0x48] sm:$0xff]
  %v223 = vld [vmem:[%s5 + $0x50] sm:$0xff]
  %v224 = vld [vmem:[%s5 + $0x58] sm:$0xff]
  %v225 = vld [vmem:[%s5 + $0x60] sm:$0xff]
  %v226 = vld [vmem:[%s5 + $0x68] sm:$0xff]
  %v227 = vld [vmem:[%s5 + $0x70] sm:$0xff]
  %v228 = vld [vmem:[%s5 + $0x78] sm:$0xff]
  %v229 = vld [vmem:[%s6] sm:$0x1]
  %v231 = vlaneseq
  %v232 = vshrl.u32 %v231, 7
  %v233 = vsub.s32 0, %v232
  %v234 = vrot.slane %v229, %v233
  %236 = vmatprep.subr.mxu0 0.0
  %237 = vmatpush1.msra.mxu0 %v228
  %238 = vmatprep.subr.mxu0 0.0
  %239 = vmatpush1.msra.mxu0 %v227
  %240 = vmatprep.subr.mxu0 0.0
  %241 = vmatpush1.msra.mxu0 %v226
  %242 = vmatprep.subr.mxu0 0.0
  %243 = vmatpush1.msra.mxu0 %v225
  %244 = vmatprep.subr.mxu0 0.0
  %245 = vmatpush1.msra.mxu0 %v224
  %246 = vmatprep.subr.mxu0 0.0
  %247 = vmatpush1.msra.mxu0 %v223
  %248 = vmatprep.subr.mxu0 0.0
  %249 = vmatpush1.msra.mxu0 %v222
  %250 = vmatprep.subr.mxu0 0.0
  %251 = vmatpush1.msra.mxu0 %v221
  %252 = vmatprep.subr.mxu0 0.0
  %253 = vmatpush1.msra.mxu0 %v220
  %254 = vmatprep.subr.mxu0 0.0
  %255 = vmatpush1.msra.mxu0 %v219
  %256 = vmatprep.subr.mxu0 0.0
  %257 = vmatpush1.msra.mxu0 %v218
  %258 = vmatprep.subr.mxu0 0.0
  %259 = vmatpush1.msra.mxu0 %v217
  %260 = vmatprep.subr.mxu0 0.0
  %261 = vmatpush1.msra.mxu0 %v216
  %262 = vmatprep.subr.mxu0 0.0
  %263 = vmatpush1.msra.mxu0 %v215
  %264 = vmatprep.subr.mxu0 0.0
  %265 = vmatpush1.msra.mxu0 %v214
  %266 = vmatprep.subr.mxu0 0.0
  %267 = vmatpush1.msra.mxu0 %v213
  %268 = vmatprep.subr.mxu0 0.0
  %269 = vmatpush2.msra.mxu0 0.0
  %270 = vmatprep.subr.mxu0 0.0
  %271 = vmatpush2.msra.mxu0 0.0
  %272 = vmatprep.subr.mxu0 0.0
  %273 = vmatpush2.msra.mxu0 0.0
  %274 = vmatprep.subr.mxu0 0.0
  %275 = vmatpush2.msra.mxu0 0.0
  %276 = vmatprep.subr.mxu0 0.0
  %277 = vmatpush2.msra.mxu0 0.0
  %278 = vmatprep.subr.mxu0 0.0
  %279 = vmatpush2.msra.mxu0 0.0
  %280 = vmatprep.subr.mxu0 0.0
  %281 = vmatpush2.msra.mxu0 0.0
  %282 = vmatprep.subr.mxu0 0.0
  %283 = vmatpush2.msra.mxu0 0.0
  %284 = vmatprep.subr.mxu0 0.0
  %285 = vmatpush2.msra.mxu0 0.0
  %286 = vmatprep.subr.mxu0 0.0
  %287 = vmatpush2.msra.mxu0 0.0
  %288 = vmatprep.subr.mxu0 0.0
  %289 = vmatpush2.msra.mxu0 0.0
  %290 = vmatprep.subr.mxu0 0.0
  %291 = vmatpush2.msra.mxu0 0.0
  %292 = vmatprep.subr.mxu0 0.0
  %293 = vmatpush2.msra.mxu0 0.0
  %294 = vmatprep.subr.mxu0 0.0
  %295 = vmatpush2.msra.mxu0 0.0
  %296 = vmatprep.subr.mxu0 0.0
  %297 = vmatpush2.msra.mxu0 0.0
  %298 = vmatprep.subr.mxu0 0.0
  %299 = vmatpush2.msra.mxu0 0.0
  %300 = vmatprep.mubr.f32.mxu0 0.0
  %301 = vmatmul.mubr.f32.gmra.mxu0 %v212
  %v302 = vpop.f32.mrf.mxu0
  %v303 = vadd.f32 %v234, %v302
  %v304 = vpop.f32.mrf.mxu0
  %305 = vdwg.mxu0
  %v306 = vld [vmem:[%s7] sm:$0xff]
  %v307 = vld [vmem:[%s7 + $0x8] sm:$0xff]
  %v308 = vld [vmem:[%s7 + $0x10] sm:$0xff]
  %v309 = vld [vmem:[%s7 + $0x18] sm:$0xff]
  %v310 = vld [vmem:[%s7 + $0x20] sm:$0xff]
  %v311 = vld [vmem:[%s7 + $0x28] sm:$0xff]
  %v312 = vld [vmem:[%s7 + $0x30] sm:$0xff]
  %v313 = vld [vmem:[%s7 + $0x38] sm:$0xff]
  %v314 = vld [vmem:[%s7 + $0x40] sm:$0xff]
  %v315 = vld [vmem:[%s7 + $0x48] sm:$0xff]
  %v316 = vld [vmem:[%s7 + $0x50] sm:$0xff]
  %v317 = vld [vmem:[%s7 + $0x58] sm:$0xff]
  %v318 = vld [vmem:[%s7 + $0x60] sm:$0xff]
  %v319 = vld [vmem:[%s7 + $0x68] sm:$0xff]
  %v320 = vld [vmem:[%s7 + $0x70] sm:$0xff]
  %v321 = vld [vmem:[%s7 + $0x78] sm:$0xff]
  %v322 = vld [vmem:[%s8] sm:$0x1]
  %v324 = vlaneseq
  %v325 = vshrl.u32 %v324, 7
  %v326 = vsub.s32 0, %v325
  %v327 = vrot.slane %v322, %v326
  %329 = vmatprep.subr.mxu0 0.0
  %330 = vmatpush1.msra.mxu0 %v321
  %331 = vmatprep.subr.mxu0 0.0
  %332 = vmatpush1.msra.mxu0 %v320
  %333 = vmatprep.subr.mxu0 0.0
  %334 = vmatpush1.msra.mxu0 %v319
  %335 = vmatprep.subr.mxu0 0.0
  %336 = vmatpush1.msra.mxu0 %v318
  %337 = vmatprep.subr.mxu0 0.0
  %338 = vmatpush1.msra.mxu0 %v317
  %339 = vmatprep.subr.mxu0 0.0
  %340 = vmatpush1.msra.mxu0 %v316
  %341 = vmatprep.subr.mxu0 0.0
  %342 = vmatpush1.msra.mxu0 %v315
  %343 = vmatprep.subr.mxu0 0.0
  %344 = vmatpush1.msra.mxu0 %v314
  %345 = vmatprep.subr.mxu0 0.0
  %346 = vmatpush1.msra.mxu0 %v313
  %347 = vmatprep.subr.mxu0 0.0
  %348 = vmatpush1.msra.mxu0 %v312
  %349 = vmatprep.subr.mxu0 0.0
  %350 = vmatpush1.msra.mxu0 %v311
  %351 = vmatprep.subr.mxu0 0.0
  %352 = vmatpush1.msra.mxu0 %v310
  %353 = vmatprep.subr.mxu0 0.0
  %354 = vmatpush1.msra.mxu0 %v309
  %355 = vmatprep.subr.mxu0 0.0
  %356 = vmatpush1.msra.mxu0 %v308
  %357 = vmatprep.subr.mxu0 0.0
  %358 = vmatpush1.msra.mxu0 %v307
  %359 = vmatprep.subr.mxu0 0.0
  %360 = vmatpush1.msra.mxu0 %v306
  %361 = vmatprep.subr.mxu0 0.0
  %362 = vmatpush2.msra.mxu0 0.0
  %363 = vmatprep.subr.mxu0 0.0
  %364 = vmatpush2.msra.mxu0 0.0
  %365 = vmatprep.subr.mxu0 0.0
  %366 = vmatpush2.msra.mxu0 0.0
  %367 = vmatprep.subr.mxu0 0.0
  %368 = vmatpush2.msra.mxu0 0.0
  %369 = vmatprep.subr.mxu0 0.0
  %370 = vmatpush2.msra.mxu0 0.0
  %371 = vmatprep.subr.mxu0 0.0
  %372 = vmatpush2.msra.mxu0 0.0
  %373 = vmatprep.subr.mxu0 0.0
  %374 = vmatpush2.msra.mxu0 0.0
  %375 = vmatprep.subr.mxu0 0.0
  %376 = vmatpush2.msra.mxu0 0.0
  %377 = vmatprep.subr.mxu0 0.0
  %378 = vmatpush2.msra.mxu0 0.0
  %379 = vmatprep.subr.mxu0 0.0
  %380 = vmatpush2.msra.mxu0 0.0
  %381 = vmatprep.subr.mxu0 0.0
  %382 = vmatpush2.msra.mxu0 0.0
  %383 = vmatprep.subr.mxu0 0.0
  %384 = vmatpush2.msra.mxu0 0.0
  %385 = vmatprep.subr.mxu0 0.0
  %386 = vmatpush2.msra.mxu0 0.0
  %387 = vmatprep.subr.mxu0 0.0
  %388 = vmatpush2.msra.mxu0 0.0
  %389 = vmatprep.subr.mxu0 0.0
  %390 = vmatpush2.msra.mxu0 0.0
  %391 = vmatprep.subr.mxu0 0.0
  %392 = vmatpush2.msra.mxu0 0.0
  %393 = vmatprep.mubr.f32.mxu0 0.0
  %394 = vmatmul.mubr.f32.gmra.mxu0 %v212
  %v395 = vpop.f32.mrf.mxu0
  %v396 = vadd.f32 %v327, %v395
  %v397 = vpop.f32.mrf.mxu0
  %398 = vdwg.mxu0
  %v399 = vtanh.pop %v303
  %vm400 = vcmask 31744
  %401 = vst.msk [vmem:[%s9] sm:$0xff] %vm400, %v399
  %v402 = vmax.f32 %v396, -20.0
  %v403 = vmin.f32 %v402, 2.0
  %v404 = vmul.f32 %v403, 1.442695
  %v405 = vpow.pop %v404
  %406 = vst.msk [vmem:[%s10] sm:$0xff] %vm400, %v405
  // Predicated region
  $region38: #{tpu_custom_call.1} parent=0 // pred_check
    _
  $region39: #{tpu_custom_call.1} parent=0 // pred_check_branch
    %408 = sbr.rel (0) target = $region41
  $region40: #{tpu_custom_call.1} parent=0 // pred_region
    _
  $region41: #{tpu_custom_call.1} parent=0 // pred_fallthru
    _
  // Predicated region
  $region42: #{tpu_custom_call.1} parent=0 // pred_check
    _
  $region43: #{tpu_custom_call.1} parent=0 // pred_check_branch
    %410 = sbr.rel (0) target = $region45
  $region44: #{tpu_custom_call.1} parent=0 // pred_region
    _
  $region45: #{tpu_custom_call.1} parent=0 // pred_fallthru
    _
  // Predicated region
  $region46: #{tpu_custom_call.1} parent=0 // pred_check
    _
  $region47: #{tpu_custom_call.1} parent=0 // pred_check_branch
    %412 = sbr.rel (0) target = $region49
  $region48: #{tpu_custom_call.1} parent=0 // pred_region
    _
  $region49: #{tpu_custom_call.1} parent=0 // pred_fallthru
    _
  // Predicated region
  $region50: #{tpu_custom_call.1} parent=0 // pred_check
    _
  $region51: #{tpu_custom_call.1} parent=0 // pred_check_branch
    %414 = sbr.rel (0) target = $region53
  $region52: #{tpu_custom_call.1} parent=0 // pred_region
    _
  $region53: #{tpu_custom_call.1} parent=0 // pred_fallthru
    _

</llo_original>
